<compile_context>
chip_gen: v6e
topology: v6e:2x2x1
jax: 0.10.0
libtpu: 0.0.40
codegen_flags: <defaults>
</compile_context>

<pallas_src>
import jax
import jax.numpy as jnp
from jax.experimental import pallas as pl
from jax.experimental.pallas import tpu as pltpu


def _t_init_random_kernel(w_ref, out_ref):
    tm, c = w_ref.shape

    # sigmoid on the VPU/EUP; cast to f32 after the DMA (input may be bf16).
    sig = jax.nn.sigmoid(w_ref[...].astype(jnp.float32))

    # Diagonal mask generated in-kernel (global row id = tile offset + local row).
    row0 = pl.program_id(0) * tm
    rows = jax.lax.broadcasted_iota(jnp.int32, (tm, c), 0) + row0
    cols = jax.lax.broadcasted_iota(jnp.int32, (tm, c), 1)
    diag = rows == cols

    # T = I + sig * co  ==  1 on the diagonal, sigmoid(w) off-diagonal.
    t = jnp.where(diag, jnp.float32(1.0), sig)

    # L1 row norm: every entry is >= 0, so |T| == T (no abs needed).
    # Exact divide -- memory-bound kernel, exactness is free (the approximate
    # reciprocal was the source of the previous correctness failure).
    denom = jnp.maximum(jnp.sum(t, axis=1, keepdims=True), jnp.float32(1e-12))
    out_ref[...] = (t / denom).astype(out_ref.dtype)


def _choose_tile_rows(C: int, in_itemsize: int) -> int:
    """Pick the row-tile size.

    * ~16 MiB per-tile budget for (input + f32 output), double-buffered.
    * At least 2 row tiles when legal so the "parallel" grid axis can shard
      across v7x's two TensorCores (no effect on v5e/v6e, single TC).
    * Rows rounded to 16 for 2-byte inputs (bf16 sublane packing), else 8.
    """
    align = 16 if in_itemsize == 2 else 8
    if C < 2 * align:
        return C  # too small to split legally; single full-extent tile.
    per_row_bytes = 2 * C * (in_itemsize + 4)          # 2 buffers x (in + f32 out)
    budget_rows = (16 * 1024 * 1024) // max(per_row_bytes, 1)
    half_rows = ((C // 2) // align) * align            # force >= 2 tiles (v7x megacore)
    tm = max(align, min(budget_rows, half_rows))
    return max(align, (tm // align) * align)


def t_init_random_forward(w: jax.Array) -> jax.Array:
    """Compute the normalized transition matrix T from parameter w (C, C)."""
    C = w.shape[0]
    assert w.shape == (C, C)

    in_itemsize = jnp.dtype(w.dtype).itemsize
    tm = _choose_tile_rows(C, in_itemsize)
    grid = (pl.cdiv(C, tm),)

    in_spec = pl.BlockSpec((tm, C), lambda i: (i, 0))
    out_spec = pl.BlockSpec((tm, C), lambda i: (i, 0))

    # Right-size the scoped VMEM limit from the actual tiles (double-buffered
    # in + out) plus slack; cap at 64 MiB (v7x per-TC VMEM).
    tile_bytes = 2 * tm * C * (in_itemsize + 4)
    vmem_limit = min(64 * 1024 * 1024,
                     max(tile_bytes + 2 * 1024 * 1024, 4 * 1024 * 1024))

    return pl.pallas_call(
        _t_init_random_kernel,
        out_shape=jax.ShapeDtypeStruct((C, C), jnp.float32),
        grid=grid,
        in_specs=[in_spec],
        out_specs=out_spec,
        compiler_params=pltpu.CompilerParams(
            dimension_semantics=("parallel",),
            vmem_limit_bytes=vmem_limit,
        ),
    )(w)


def t_init_random_reference(w: jax.Array) -> jax.Array:
    """Pure-JAX reference matching the PyTorch module."""
    C = w.shape[0]
    eye = jnp.eye(C, dtype=jnp.float32)
    co = jnp.ones((C, C), dtype=jnp.float32) - eye
    T = eye + jax.nn.sigmoid(w.astype(jnp.float32)) * co
    denom = jnp.maximum(jnp.sum(jnp.abs(T), axis=1, keepdims=True), 1e-12)
    return T / denom


if __name__ == "__main__":
    num_classes = 32  # small shape consistent with the module

    # Deterministic parameter setup: the module initializes w = -init * ones.
    # Draw the scalar `init` deterministically from PRNGKey(0).
    key = jax.random.PRNGKey(0)
    init = jax.random.uniform(key, (), minval=1.0, maxval=4.0)
    w = -init * jnp.ones((num_classes, num_classes), dtype=jnp.float32)

    T = t_init_random_forward(w)
    T = jax.block_until_ready(T)

    # Sanity checks against the pure-JAX reference and the row-stochastic
    # property. Exact divide in-kernel -> tight tolerances.
    T_ref = t_init_random_reference(w)
    assert T.shape == (num_classes, num_classes)
    assert jnp.allclose(T, T_ref, atol=1e-5, rtol=1e-5)
    assert jnp.allclose(jnp.sum(T, axis=1), jnp.ones((num_classes,)), atol=1e-5)

    print("KERNEL_OK")
</pallas_src>

<mosaic_0001>
module attributes {stable_mosaic.version = 11 : i64} {
  func.func @_t_init_random_kernel(%arg0: i32, %arg1: memref<16x32xf32, #tpu.memory_space<vmem>>, %arg2: memref<16x32xf32, #tpu.memory_space<vmem>>) attributes {dimension_semantics = [#tpu.dimension_semantics<parallel>], iteration_bounds = array<i64: 2>, scalar_prefetch = 0 : i64, scratch_operands = 0 : i64, tpu.core_type = #tpu.core_type<tc>, window_params = [{transform_indices = @transform_0, window_bounds = array<i64: 16, 32>}, {transform_indices = @transform_1, window_bounds = array<i64: 16, 32>}]} {
    %c0 = arith.constant 0 : index
    %c0_0 = arith.constant 0 : index
    %0 = vector.load %arg1[%c0, %c0_0] : memref<16x32xf32, #tpu.memory_space<vmem>>, vector<16x32xf32>
    %1 = arith.negf %0 : vector<16x32xf32>
    %2 = math.exp %1 : vector<16x32xf32>
    %cst = arith.constant 1.000000e+00 : f32
    %3 = vector.broadcast %cst : f32 to vector<16x32xf32>
    %4 = arith.addf %3, %2 : vector<16x32xf32>
    %5 = arith.divf %3, %4 : vector<16x32xf32>
    %c16_i32 = arith.constant 16 : i32
    %6 = arith.muli %arg0, %c16_i32 : i32
    %7 = tpu.iota {dimensions = array<i32: 0>} : vector<16x32xi32>
    %8 = vector.broadcast %6 : i32 to vector<16x32xi32>
    %9 = arith.addi %7, %8 : vector<16x32xi32>
    %10 = tpu.iota {dimensions = array<i32: 1>} : vector<16x32xi32>
    %11 = arith.cmpi eq, %9, %10 : vector<16x32xi32>
    %cst_1 = arith.constant 1.000000e+00 : f32
    %12 = vector.broadcast %cst_1 : f32 to vector<16x32xf32>
    %13 = arith.select %11, %12, %5 : vector<16x32xi1>, vector<16x32xf32>
    %cst_2 = arith.constant dense<0.000000e+00> : vector<16xf32>
    %14 = vector.multi_reduction <add>, %13, %cst_2 [1] : vector<16x32xf32> to vector<16xf32>
    %15 = vector.shape_cast %14 : vector<16xf32> to vector<16x1xf32>
    %cst_3 = arith.constant 9.99999996E-13 : f32
    %16 = vector.broadcast %cst_3 : f32 to vector<16x1xf32>
    %17 = arith.maximumf %15, %16 : vector<16x1xf32>
    %18 = vector.broadcast %17 : vector<16x1xf32> to vector<16x32xf32>
    %19 = arith.divf %13, %18 : vector<16x32xf32>
    %c0_4 = arith.constant 0 : index
    %c0_5 = arith.constant 0 : index
    %20 = vector.load %arg2[%c0_4, %c0_5] : memref<16x32xf32, #tpu.memory_space<vmem>>, vector<16x32xf32>
    tpu.vector_store %arg2[%c0_4, %c0_5], %19 {strides = array<i32>} : memref<16x32xf32, #tpu.memory_space<vmem>>, vector<16x32xf32>,
    return
  }
  func.func @transform_0(%arg0: i32) -> (i32, i32) {
    %c0_i32 = arith.constant 0 : i32
    %c0_i32_0 = arith.constant 0 : i32
    return %arg0, %c0_i32 : i32, i32
  }
  func.func @transform_1(%arg0: i32) -> (i32, i32) {
    %c0_i32 = arith.constant 0 : i32
    %c0_i32_0 = arith.constant 0 : i32
    return %arg0, %c0_i32 : i32, i32
  }
}

</mosaic_0001>

<llo_original>
// kernel: tpu_custom_call.1
$region0: #{tpu_custom_call.1}
  #allocation0 [shape = 'u32[]', space=smem, size = 0x4, offset = 0x4, fixed_abs, tag = 'smem constant byte address 0x4 - core index']
  #allocation1 [shape = 'u32[144,128]{1,0:T(1,128)}', space=vmem, size = 0x12000, scoped, tag = 'internal scratch']
  %s0 = inlined_call_operand.hbm [shape: f32[32,32], index: 0, kind: input, shape index: {}]
  %s1 = inlined_call_operand.hbm [shape: f32[32,32], index: 1, kind: output, shape index: {}]
  %s2 = sld [smem:[#allocation0]]
  $region41: #{tpu_custom_call.1} parent=0
    _
  %s4 = ssub.s32 1, %s2
  %s5 = scalar_select 0, %s4, %s2
  $region1: #{tpu_custom_call.1} parent=0
    #allocation2 [shape = 'u8[16384]{0}', space=vmem, size = 0x4000, scoped, tag = 'input window, operand 0']
    #allocation3 [shape = 's32[2]{0}', space=sflag, size = 0x8, scoped, tag = 'scoped memory for tpu_custom_call.1']
    #allocation4 [shape = 's32[2]{0}', space=sflag, size = 0x8, scoped, tag = 'scoped memory for tpu_custom_call.1']
    #allocation5 [shape = 'u8[16384]{0}', space=vmem, size = 0x4000, scoped, tag = 'output window, operand 0']
    %6 = vsyncpa [#allocation3], 0
    %s7 = scalar_lea.sflag [#allocation3], 1
    %8 = vsyncpa %s7, 0
    %9 = vsyncpa [#allocation4], 0
    %s10 = scalar_lea.sflag [#allocation4], 1
    %11 = vsyncpa %s10, 0
    loop: start=0, step=1, limit=4
    $region2: #{tpu_custom_call.1} parent=1 // loop_pre_header
      _
    $region3: #{tpu_custom_call.1} parent=1 // loop_header
      %s13 = sphi 0, %s17
      %p14 = scmp.ge.s32.totalorder %s13, 4
      %s23 = sphi 0, %s25
      %s26 = sphi 0, %s23
      %s27 = sphi 0, %s26
      %s43 = sphi 0, %s27
      %s49 = sphi 0, %s51
      %s52 = sphi 0, %s49
      %s53 = sphi 0, %s52
      %s69 = sphi 0, %s53
    $region4: #{tpu_custom_call.1} parent=1 // loop_header_branch
      %16 = sbr.rel (%p14) target = $region8
    $region5: #{tpu_custom_call.1} parent=1 // loop_body
      %s18 = ssub.s32 %s13, 1
      %s19 = ssub.s32 %s13, 2
      %s20 = sadd.s32 %s13, 1
      %s21 = ssub.s32 %s13, %s20
      %p22 = scmp.eq.s32.totalorder %s21, 0
      %s24 = sadd.s32 %s23, 1
      %s25 = scalar_select %p22, %s23, %s24
      %p28 = pneg %p22
      %p29 = scmp.eq.s32.totalorder %s13, 1
      %p30 = por %p28, %p29
      %p31 = scmp.ne.s32.totalorder %s23, %s26
      %p32 = scmp.eq.s32.totalorder %s13, 0
      %p33 = por %p31, %p32
      %p34 = scmp.ne.s32.totalorder %s23, %s26
      %p35 = scmp.eq.s32.totalorder %s18, 1
      %p36 = por %p34, %p35
      %p37 = scmp.ne.s32.totalorder %s26, %s27
      %p38 = scmp.eq.s32.totalorder %s18, 0
      %p39 = por %p37, %p38
      %p40 = scmp.ne.s32.totalorder %s26, %s27
      %p41 = scmp.eq.s32.totalorder %s19, 1
      %p42 = por %p40, %p41
      %p44 = scmp.ne.s32.totalorder %s27, %s43
      %p45 = scmp.eq.s32.totalorder %s19, 0
      %p46 = por %p44, %p45
      %s47 = ssub.s32 %s13, %s20
      %p48 = scmp.eq.s32.totalorder %s47, 0
      %s50 = sadd.s32 %s49, 1
      %s51 = scalar_select %p48, %s49, %s50
      %p54 = pneg %p48
      %p55 = scmp.eq.s32.totalorder %s13, 1
      %p56 = por %p54, %p55
      %p57 = scmp.ne.s32.totalorder %s49, %s52
      %p58 = scmp.eq.s32.totalorder %s13, 0
      %p59 = por %p57, %p58
      %p60 = scmp.ne.s32.totalorder %s49, %s52
      %p61 = scmp.eq.s32.totalorder %s18, 1
      %p62 = por %p60, %p61
      %p63 = scmp.ne.s32.totalorder %s52, %s53
      %p64 = scmp.eq.s32.totalorder %s18, 0
      %p65 = por %p63, %p64
      %p66 = scmp.ne.s32.totalorder %s52, %s53
      %p67 = scmp.eq.s32.totalorder %s19, 1
      %p68 = por %p66, %p67
      %p70 = scmp.ne.s32.totalorder %s53, %s69
      %p71 = scmp.eq.s32.totalorder %s19, 0
      %p72 = por %p70, %p71
      %p73 = scmp.le.s32.totalorder 1, %s13
      %p74 = scmp.lt.s32.totalorder %s13, 3
      %p75 = pnand %p73, %p74
      %p76 = pneg %p75
      // Predicated region
      $region9: #{tpu_custom_call.1} parent=5 // pred_check
        _
      $region10: #{tpu_custom_call.1} parent=5 // pred_check_branch
        %78 = sbr.rel (%p75) target = $region12
      $region11: #{tpu_custom_call.1} parent=5 // pred_region
        %s79 = ssub.s32 %s13, 1
      $region12: #{tpu_custom_call.1} parent=5 // pred_fallthru
        _
      %p80 = scmp.lt.s32.totalorder %s13, 2
      // Predicated region
      $region13: #{tpu_custom_call.1} parent=5 // pred_check
        %p81 = pneg %p80
      $region14: #{tpu_custom_call.1} parent=5 // pred_check_branch
        %83 = sbr.rel (%p81) target = $region16
      $region15: #{tpu_custom_call.1} parent=5 // pred_region
        // Predicated region
        $region17: #{tpu_custom_call.1} parent=15 // pred_check
          %p84 = pneg %p33
        $region18: #{tpu_custom_call.1} parent=15 // pred_check_branch
          %86 = sbr.rel (%p84) target = $region20
        $region19: #{tpu_custom_call.1} parent=15 // pred_region
          %s87 = sand.u32 %s23, 1
          %s88 = scalar_lea.sflag [#allocation3], %s87
          %s89 = sand.u32 %s23, 1
          %s90 = smul.addr %s89, 16
          %s91 = scalar_lea.vmem [#allocation2], %s90
          %s92 = smul.u32 2, %s13
          %s94 = ssub.s32 256, 256
          %95 = vsyncadd %s88, %s94
          %s96 = smul.addr %s92, 128
          %s97 = scalar_lea.hbm %s0, %s96
          %s98 = sshll.u32 %s91, 4
          %s99 = int_to_ptr.vmem [resolvable:$true] %s98
          %104 = dma.hbm_to_vmem [thread:$0]  %s97, 256, %s99, %s88, 128, 128, 8
        $region20: #{tpu_custom_call.1} parent=15 // pred_fallthru
          _
      $region16: #{tpu_custom_call.1} parent=5 // pred_fallthru
        _
      %p105 = scmp.le.s32.totalorder 1, %s13
      %p106 = scmp.lt.s32.totalorder %s13, 3
      %p107 = pnand %p105, %p106
      %p108 = pneg %p107
      // Predicated region
      $region21: #{tpu_custom_call.1} parent=5 // pred_check
        _
      $region22: #{tpu_custom_call.1} parent=5 // pred_check_branch
        %110 = sbr.rel (%p107) target = $region24
      $region23: #{tpu_custom_call.1} parent=5 // pred_region
        %s111 = ssub.s32 %s13, 1
        %s112 = sand.u32 %s26, 1
        %s113 = scalar_lea.sflag [#allocation3], %s112
        %s114 = sand.u32 %s26, 1
        %s115 = smul.addr %s114, 16
        %s116 = scalar_lea.vmem [#allocation2], %s115
        // Predicated region
        $region25: #{tpu_custom_call.1} parent=23 // pred_check
          %p117 = pneg %p39
        $region26: #{tpu_custom_call.1} parent=23 // pred_check_branch
          %119 = sbr.rel (%p117) target = $region28
        $region27: #{tpu_custom_call.1} parent=23 // pred_region
          %120 = dma.done %s113, 256
        $region28: #{tpu_custom_call.1} parent=23 // pred_fallthru
          _
        %s121 = sand.u32 %s26, 1
        %s122 = scalar_lea.sflag [#allocation3], %s121
        %s123 = sand.u32 %s26, 1
        %s124 = smul.addr %s123, 16
        %s125 = scalar_lea.vmem [#allocation2], %s124
        %p126 = pneg %p39
        %p127 = pneg %p36
        %p128 = pneg %p65
        %p129 = pneg %p62
        %s130 = sand.u32 %s52, 1
        %s131 = scalar_lea.sflag [#allocation4], %s130
        %s132 = sand.u32 %s52, 1
        %s133 = smul.addr %s132, 16
        %s134 = scalar_lea.vmem [#allocation5], %s133
        %s135 = smul.u32 2, %s18
        %s136 = smul.u32 2, %s18
        %v137 = vld [vmem:[%s116] sm:$0xff]
        %v138 = vld [vmem:[%s116 + $0x8] sm:$0xff]
        %v139 = vxor.u32 %v137, 2147483648
        %v140 = vxor.u32 %v138, 2147483648
        %v141 = vmul.f32 %v139, 1.442695
        %v142 = vpow.pop %v141
        %v143 = vmul.f32 %v140, 1.442695
        %v144 = vpow.pop %v143
        %v145 = vadd.f32 %v142, 1.0
        %v146 = vadd.f32 %v144, 1.0
        %v147 = vrcp.pop %v145
        %v148 = vmul.f32 1.0, %v147
        %v149 = vrcp.pop %v146
        %v150 = vmul.f32 1.0, %v149
        %s151 = smul.u32 %s18, 16
        %v152 = vlaneseq
        %v153 = vshrl.u32 %v152, 7
        %v154 = vadd.s32 %v153, 8
        %v155 = vstv %s151
        %v156 = vadd.s32 %v153, %v155
        %v157 = vadd.s32 %v154, %v155
        %v158 = vlaneseq
        %v159 = vand.u32 %v158, 127
        %vm160 = vcmp.eq.s32.totalorder %v156, %v159
        %vm161 = vcmp.eq.s32.totalorder %v157, %v159
        %v162 = vsel %vm160, 1.0, %v148
        %v163 = vsel %vm161, 1.0, %v150
        %vm164 = vcmask 261120
        %v165 = vsel %vm164, %v162, 0.0
        %166 = vadd.xlane.f32.xlu0 %v165
        %v167 = vpop.xlane.xlu0 %166
        %v168 = vsel %vm164, %v163, 0.0
        %169 = vadd.xlane.f32.xlu0 %v168
        %v170 = vpop.xlane.xlu0 %169
        %v171 = vmax.f32 %v167, 1e-12
        %v172 = vmax.f32 %v170, 1e-12
        %v173 = vrcp.pop %v171
        %v174 = vmul.f32 %v162, %v173
        %v175 = vrcp.pop %v172
        %v176 = vmul.f32 %v163, %v175
        %177 = vst.msk [vmem:[%s134] sm:$0xff] %vm164, %v174
        %178 = vst.msk [vmem:[%s134 + $0x8] sm:$0xff] %vm164, %v176
        %s179 = sand.u32 %s52, 1
        %s180 = scalar_lea.sflag [#allocation4], %s179
        %s181 = sand.u32 %s52, 1
        %s182 = smul.addr %s181, 16
        %s183 = scalar_lea.vmem [#allocation5], %s182
        // Predicated region
        $region29: #{tpu_custom_call.1} parent=23 // pred_check
          %p184 = pneg %p62
        $region30: #{tpu_custom_call.1} parent=23 // pred_check_branch
          %186 = sbr.rel (%p184) target = $region32
        $region31: #{tpu_custom_call.1} parent=23 // pred_region
          %s187 = smul.u32 2, %s18
          %s189 = ssub.s32 256, 256
          %190 = vsyncadd %s180, %s189
          %s191 = smul.addr %s187, 128
          %s192 = scalar_lea.hbm %s1, %s191
          %s193 = sshll.u32 %s183, 4
          %s194 = int_to_ptr.vmem [resolvable:$true] %s193
          %199 = dma.vmem_to_hbm [thread:$0]  %s194, 256, %s192, %s180, 128, 128, 8
        $region32: #{tpu_custom_call.1} parent=23 // pred_fallthru
          _
      $region24: #{tpu_custom_call.1} parent=5 // pred_fallthru
        _
      %p200 = scmp.le.s32.totalorder 2, %s13
      // Predicated region
      $region33: #{tpu_custom_call.1} parent=5 // pred_check
        %p201 = pneg %p200
      $region34: #{tpu_custom_call.1} parent=5 // pred_check_branch
        %203 = sbr.rel (%p201) target = $region36
      $region35: #{tpu_custom_call.1} parent=5 // pred_region
        %s204 = ssub.s32 %s13, 2
        // Predicated region
        $region37: #{tpu_custom_call.1} parent=35 // pred_check
          %p205 = pneg %p68
        $region38: #{tpu_custom_call.1} parent=35 // pred_check_branch
          %207 = sbr.rel (%p205) target = $region40
        $region39: #{tpu_custom_call.1} parent=35 // pred_region
          %s208 = sand.u32 %s53, 1
          %s209 = scalar_lea.sflag [#allocation4], %s208
          %s210 = sand.u32 %s53, 1
          %s211 = smul.addr %s210, 16
          %s212 = scalar_lea.vmem [#allocation5], %s211
          %213 = dma.done %s209, 256
        $region40: #{tpu_custom_call.1} parent=35 // pred_fallthru
          _
      $region36: #{tpu_custom_call.1} parent=5 // pred_fallthru
        _
    $region6: #{tpu_custom_call.1} parent=1 // loop_footer
      %s17 = sadd.s32 1, %s13
    $region7: #{tpu_custom_call.1} parent=1 // loop_footer_branch
      %12 = sbr.rel target = $region3
    $region8: #{tpu_custom_call.1} parent=1 // loop_exit
      _
    %214 = vsyncpa [#allocation3], 1
    %s215 = scalar_lea.sflag [#allocation3], 1
    %216 = vsyncpa %s215, 1
    %217 = vsyncpa [#allocation4], 1
    %s218 = scalar_lea.sflag [#allocation4], 1
    %219 = vsyncpa %s218, 1

</llo_original>
